<compile_context>
chip_gen: v7x
topology: tpu7x:2x2x1
jax: 0.10.0
libtpu: 0.0.40
codegen_flags: <defaults>
</compile_context>

<pallas_src>
import functools

import jax
import jax.numpy as jnp
from jax.experimental import pallas as pl
from jax.experimental.pallas import tpu as pltpu


_LANES = 128
_SUBLANES = 8
# Per buffered x block; double-buffered by the pipeline -> ~2x this in VMEM.  2-8 MiB
# tiles measure at 85%+ of HBM roofline; 4 MiB leaves ample headroom under the 32 MiB
# scoped limit (v7x default) for the weight block, output, (tb,128) f32 partials and the
# (tb,1) accumulator.
_TARGET_TILE_BYTES = 4 * 1024 * 1024
# Max feature-tile width: bounds the static 128-lane unroll (<=64 chunks) and per-step
# f32 temporaries; wider D gets K-tiled.
_MAX_TK = 64 * _LANES
# >= 2 batch tiles per TensorCore when the batch axis is sharded across v7x's 2 TCs.
_MIN_BATCH_TILES = 4
_VMEM_LIMIT_BYTES = 32 * 1024 * 1024  # conservative: v7x is 64 MiB physical / 32 MiB scoped


def _round_down_to_multiple(v, m):
    return max(m, (v // m) * m)


def _choose_tiles(B, D, itemsize):
    """Pick (tb, tk): byte-budgeted batch tile + bounded feature tile."""
    tk = D if D <= _MAX_TK else _MAX_TK
    rows = max(_SUBLANES, _TARGET_TILE_BYTES // max(1, tk * itemsize))
    if B <= _SUBLANES:
        tb = B  # block == full batch dim (always legal)
    else:
        tb = _round_down_to_multiple(min(B, rows), _SUBLANES)
        # v7x megacore: make sure both TensorCores get >= 2 batch tiles when B allows it.
        if B >= _MIN_BATCH_TILES * _SUBLANES:
            tb = min(tb, _round_down_to_multiple(B // _MIN_BATCH_TILES, _SUBLANES))
    return tb, tk


def _domain_classifier_kernel(x_ref, w_ref, b_ref, o_ref, acc_ref, *, d_total, tk):
    # x_ref:   (tb, tk) native dtype   (VMEM, streamed)
    # w_ref:   (1, tk)  x.dtype        (VMEM, resident across batch tiles)
    # b_ref:   (1,)     float32        (SMEM scalar)
    # o_ref:   (tb, 1)  output tile    (written on the last K step only)
    # acc_ref: (tb, 1)  float32 scratch, persists across the K ("arbitrary") grid axis
    k = pl.program_id(1)

    @pl.when(k == 0)
    def _init():
        acc_ref[...] = jnp.zeros_like(acc_ref)

    def chunk_products(x_chunk, w_chunk, col0):
        # Native-dtype multiply (bf16 VPU on v6e/v7x; Mosaic inserts the f32 cast on
        # v5e, where HBM slack hides it), products accumulated in f32.
        prod = (x_chunk * w_chunk).astype(jnp.float32)
        if d_total % tk != 0:  # static; only the huge-D ragged-last-K-block path
            col = k * tk + col0 + jax.lax.broadcasted_iota(
                jnp.int32, (1, x_chunk.shape[-1]), 1)
            prod = jnp.where(col < d_total, prod, 0.0)
        return prod

    if tk > _LANES and tk % _LANES == 0:
        # VALU adds across 128-lane chunks into one (tb, 128) f32 partial, then a single
        # XLU lane-reduce per tile (keeps the 2 XLUs on v6e/v7x off the critical path).
        part = chunk_products(x_ref[:, pl.ds(0, _LANES)], w_ref[:, pl.ds(0, _LANES)], 0)
        for c in range(1, tk // _LANES):
            part = part + chunk_products(
                x_ref[:, pl.ds(c * _LANES, _LANES)],
                w_ref[:, pl.ds(c * _LANES, _LANES)],
                c * _LANES,
            )
        partial = jnp.sum(part, axis=-1, keepdims=True)
    else:
        partial = jnp.sum(chunk_products(x_ref[...], w_ref[...], 0),
                          axis=-1, keepdims=True)

    acc_ref[...] += partial

    @pl.when(k == pl.num_programs(1) - 1)
    def _finalize():
        y = acc_ref[...] + b_ref[0]  # scalar bias from SMEM, f32
        o_ref[...] = jax.nn.sigmoid(y).astype(o_ref.dtype)


@jax.jit
def domain_classifier(x, weight, bias):
    """Pallas equivalent of: sigmoid(nn.Linear(D, 1)(x)).

    Args:
      x:      (B, D) float32 or bfloat16 (streamed in its native dtype)
      weight: (1, D) PyTorch nn.Linear layout (out_features, in_features)
      bias:   (1,)
    Returns:
      (B, 1) in x.dtype (matches the activation dtype of a mixed-precision head).
    """
    B, D = x.shape
    assert weight.shape == (1, D), weight.shape

    itemsize = jnp.dtype(x.dtype).itemsize
    tb, tk = _choose_tiles(B, D, itemsize)
    grid = (pl.cdiv(B, tb), pl.cdiv(D, tk))

    # Weight cast to x.dtype so the in-kernel multiply never forces a whole-tile f32
    # cast of x (the v7x VALU-bound failure mode for bf16 inputs).  Bias is an f32 SMEM
    # scalar.  (Pre-broadcasting w to (8, D) is a verify-in-the-bundle few-% tweak; the
    # implicit sublane broadcast is kept here.)
    w = weight.astype(x.dtype)
    b = bias.reshape((1,)).astype(jnp.float32)

    kernel = functools.partial(_domain_classifier_kernel, d_total=D, tk=tk)

    return pl.pallas_call(
        kernel,
        out_shape=jax.ShapeDtypeStruct((B, 1), x.dtype),
        grid_spec=pltpu.PrefetchScalarGridSpec(
            num_scalar_prefetch=0,
            grid=grid,
            in_specs=[
                pl.BlockSpec((tb, tk), lambda i, k: (i, k)),        # streamed x tiles
                pl.BlockSpec((1, tk), lambda i, k: (0, k)),         # resident weight row
                pl.BlockSpec(memory_space=pltpu.MemorySpace.SMEM),  # scalar bias
            ],
            out_specs=pl.BlockSpec((tb, 1), lambda i, k: (i, 0)),
            scratch_shapes=[pltpu.VMEM((tb, 1), jnp.float32)],      # f32 accumulator
        ),
        compiler_params=pltpu.CompilerParams(
            # Independent batch tiles shard across v7x's 2 TCs; K is the reduction axis.
            dimension_semantics=("parallel", "arbitrary"),
            vmem_limit_bytes=_VMEM_LIMIT_BYTES,
        ),
    )(x, w, b)


if __name__ == "__main__":
    key = jax.random.PRNGKey(0)
    kx, kw, kb = jax.random.split(key, 3)

    B, D = 8, 32  # batch=8, input_dim=32

    # Deterministic init mimicking nn.Linear's uniform(-1/sqrt(D), 1/sqrt(D))
    bound = 1.0 / jnp.sqrt(jnp.float32(D))
    weight = jax.random.uniform(kw, (1, D), jnp.float32, -bound, bound)
    bias = jax.random.uniform(kb, (1,), jnp.float32, -bound, bound)
    x = jax.random.normal(kx, (B, D), jnp.float32)

    out = jax.block_until_ready(domain_classifier(x, weight, bias))

    # Reference check against plain JAX
    ref = jax.nn.sigmoid(x @ weight.T + bias)
    assert out.shape == (B, 1)
    assert jnp.allclose(out, ref.astype(out.dtype), atol=1e-5, rtol=1e-5)

    print("KERNEL_OK")
</pallas_src>

<mosaic_0001>
module attributes {stable_mosaic.version = 11 : i64} {
  func.func @_domain_classifier_kernel(%arg0: i32, %arg1: i32, %arg2: memref<8x32xf32, #tpu.memory_space<vmem>>, %arg3: memref<1x32xf32, #tpu.memory_space<vmem>>, %arg4: memref<1xf32, #tpu.memory_space<smem>>, %arg5: memref<8x1xf32, #tpu.memory_space<vmem>>, %arg6: memref<8x1xf32, #tpu.memory_space<vmem>>) attributes {dimension_semantics = [#tpu.dimension_semantics<parallel>, #tpu.dimension_semantics<arbitrary>], iteration_bounds = array<i64: 1, 1>, scalar_prefetch = 0 : i64, scratch_operands = 1 : i64, tpu.core_type = #tpu.core_type<tc>, window_params = [{transform_indices = @transform_0, window_bounds = array<i64: 8, 32>}, {transform_indices = @transform_1, window_bounds = array<i64: 1, 32>}, {transform_indices = @transform_2, window_bounds = array<i64: 1>}, {transform_indices = @transform_3, window_bounds = array<i64: 8, 1>}]} {
    %c0_i32 = arith.constant 0 : i32
    %0 = arith.cmpi eq, %arg1, %c0_i32 : i32
    %1 = arith.extui %0 : i1 to i32
    %c0_i32_0 = arith.constant 0 : i32
    %2 = arith.cmpi ne, %1, %c0_i32_0 : i32
    scf.if %2 {
      %cst_10 = arith.constant 0.000000e+00 : f32
      %15 = vector.broadcast %cst_10 : f32 to vector<8x1xf32>
      %c0_11 = arith.constant 0 : index
      %c0_12 = arith.constant 0 : index
      %16 = vector.load %arg6[%c0_11, %c0_12] : memref<8x1xf32, #tpu.memory_space<vmem>>, vector<8x1xf32>
      tpu.vector_store %arg6[%c0_11, %c0_12], %15 {strides = array<i32>} : memref<8x1xf32, #tpu.memory_space<vmem>>, vector<8x1xf32>,
    } else {
    }
    %c0 = arith.constant 0 : index
    %c0_1 = arith.constant 0 : index
    %3 = vector.load %arg2[%c0, %c0_1] : memref<8x32xf32, #tpu.memory_space<vmem>>, vector<8x32xf32>
    %c0_2 = arith.constant 0 : index
    %c0_3 = arith.constant 0 : index
    %4 = vector.load %arg3[%c0_2, %c0_3] : memref<1x32xf32, #tpu.memory_space<vmem>>, vector<1x32xf32>
    %5 = vector.broadcast %4 : vector<1x32xf32> to vector<8x32xf32>
    %6 = arith.mulf %3, %5 : vector<8x32xf32>
    %cst = arith.constant dense<0.000000e+00> : vector<8xf32>
    %7 = vector.multi_reduction <add>, %6, %cst [1] : vector<8x32xf32> to vector<8xf32>
    %8 = vector.shape_cast %7 : vector<8xf32> to vector<8x1xf32>
    %c0_4 = arith.constant 0 : index
    %c0_5 = arith.constant 0 : index
    %9 = vector.load %arg6[%c0_4, %c0_5] : memref<8x1xf32, #tpu.memory_space<vmem>>, vector<8x1xf32>
    %10 = arith.addf %9, %8 : vector<8x1xf32>
    %c0_6 = arith.constant 0 : index
    %c0_7 = arith.constant 0 : index
    %11 = vector.load %arg6[%c0_6, %c0_7] : memref<8x1xf32, #tpu.memory_space<vmem>>, vector<8x1xf32>
    tpu.vector_store %arg6[%c0_6, %c0_7], %10 {strides = array<i32>} : memref<8x1xf32, #tpu.memory_space<vmem>>, vector<8x1xf32>,
    %c0_i32_8 = arith.constant 0 : i32
    %12 = arith.cmpi eq, %arg1, %c0_i32_8 : i32
    %13 = arith.extui %12 : i1 to i32
    %c0_i32_9 = arith.constant 0 : i32
    %14 = arith.cmpi ne, %13, %c0_i32_9 : i32
    scf.if %14 {
      %c0_10 = arith.constant 0 : index
      %c0_11 = arith.constant 0 : index
      %15 = vector.load %arg6[%c0_10, %c0_11] : memref<8x1xf32, #tpu.memory_space<vmem>>, vector<8x1xf32>
      %c0_12 = arith.constant 0 : index
      %16 = memref.load %arg4[%c0_12] : memref<1xf32, #tpu.memory_space<smem>>
      %17 = vector.broadcast %16 : f32 to vector<8x1xf32>
      %18 = arith.addf %15, %17 : vector<8x1xf32>
      %19 = arith.negf %18 : vector<8x1xf32>
      %20 = math.exp %19 : vector<8x1xf32>
      %cst_13 = arith.constant 1.000000e+00 : f32
      %21 = vector.broadcast %cst_13 : f32 to vector<8x1xf32>
      %22 = arith.addf %21, %20 : vector<8x1xf32>
      %23 = arith.divf %21, %22 : vector<8x1xf32>
      %c0_14 = arith.constant 0 : index
      %c0_15 = arith.constant 0 : index
      %24 = vector.load %arg5[%c0_14, %c0_15] : memref<8x1xf32, #tpu.memory_space<vmem>>, vector<8x1xf32>
      tpu.vector_store %arg5[%c0_14, %c0_15], %23 {strides = array<i32>} : memref<8x1xf32, #tpu.memory_space<vmem>>, vector<8x1xf32>,
    } else {
    }
    return
  }
  func.func @transform_0(%arg0: i32, %arg1: i32) -> (i32, i32) {
    %c0_i32 = arith.constant 0 : i32
    return %arg0, %arg1 : i32, i32
  }
  func.func @transform_1(%arg0: i32, %arg1: i32) -> (i32, i32) {
    %c0_i32 = arith.constant 0 : i32
    %c0_i32_0 = arith.constant 0 : i32
    return %c0_i32, %arg1 : i32, i32
  }
  func.func @transform_2(%arg0: i32, %arg1: i32) -> i32 {
    %c0_i32 = arith.constant 0 : i32
    %c0_i32_0 = arith.constant 0 : i32
    return %c0_i32 : i32
  }
  func.func @transform_3(%arg0: i32, %arg1: i32) -> (i32, i32) {
    %c0_i32 = arith.constant 0 : i32
    %c0_i32_0 = arith.constant 0 : i32
    return %arg0, %c0_i32 : i32, i32
  }
}

</mosaic_0001>

<llo_original>
// kernel: domain_classifier.1
$region0: #{domain_classifier.1}
  #allocation0 [shape = 'u32[]', space=smem, size = 0x4, offset = 0x4, fixed_abs, tag = 'smem constant byte address 0x4 - core index']
  #allocation1 [shape = 'u32[144,128]{1,0:T(1,128)}', space=vmem, size = 0x12000, scoped, tag = 'internal scratch']
  #allocation2 [shape = 'f32[8,1]{1,0:T(8,128)}', space=vmem, size = 0x1000, scoped, tag = 'scratch operand']
  #allocation3 [shape = 'f32[1]{0:T(128)S(6)}', space=smem, size = 0x200, scoped, tag = 'scoped memory for domain_classifier.1']
  %s0 = inlined_call_operand.hbm [shape: f32[8,32], index: 0, kind: input, shape index: {}]
  %s1 = inlined_call_operand.vmem [shape: f32[1,32], index: 1, kind: input, shape index: {}]
  %s2 = inlined_call_operand.<no memory space> [shape: f32[1], index: 2, kind: input, shape index: {}]
  %s3 = inlined_call_operand.vmem [shape: f32[8,1], index: 3, kind: output, shape index: {}]
  %s4 = sld [smem:[#allocation0]]
  $region34: #{domain_classifier.1} parent=0
    _
  %s6 = ssub.s32 1, %s4
  %s7 = scalar_select 0, %s6, %s4
  %8 = sst [smem:[#allocation3]] %s2
  $region1: #{domain_classifier.1} parent=0
    #allocation4 [shape = 'u8[4096]{0}', space=vmem, size = 0x1000, scoped, tag = 'input window, operand 0, single buffered']
    #allocation5 [shape = 's32[1]{0}', space=sflag, size = 0x4, scoped, tag = 'scoped memory for domain_classifier.1']
    %9 = vsyncpa [#allocation5], 0
    // Predicated region
    $region2: #{domain_classifier.1} parent=1 // pred_check
      _
    $region3: #{domain_classifier.1} parent=1 // pred_check_branch
      %11 = sbr.rel (0) target = $region5
    $region4: #{domain_classifier.1} parent=1 // pred_region
      %s13 = ssub.s32 128, 128
      %14 = vsyncadd [#allocation5], %s13
      %s16 = sshll.u32 [#allocation4], 4
      %s17 = int_to_ptr.vmem [resolvable:$true] %s16
      %19 = dma.hbm_to_vmem [thread:$0]  %s0, 128, %s17, [#allocation5]
    $region5: #{domain_classifier.1} parent=1 // pred_fallthru
      _
    // Predicated region
    $region6: #{domain_classifier.1} parent=1 // pred_check
      _
    $region7: #{domain_classifier.1} parent=1 // pred_check_branch
      %21 = sbr.rel (0) target = $region9
    $region8: #{domain_classifier.1} parent=1 // pred_region
      _
    $region9: #{domain_classifier.1} parent=1 // pred_fallthru
      _
    // Predicated region
    $region10: #{domain_classifier.1} parent=1 // pred_check
      _
    $region11: #{domain_classifier.1} parent=1 // pred_check_branch
      %23 = sbr.rel (0) target = $region13
    $region12: #{domain_classifier.1} parent=1 // pred_region
      _
    $region13: #{domain_classifier.1} parent=1 // pred_fallthru
      _
    // Predicated region
    $region14: #{domain_classifier.1} parent=1 // pred_check
      _
    $region15: #{domain_classifier.1} parent=1 // pred_check_branch
      %25 = sbr.rel (0) target = $region17
    $region16: #{domain_classifier.1} parent=1 // pred_region
      %26 = dma.done [#allocation5], 128
    $region17: #{domain_classifier.1} parent=1 // pred_fallthru
      _
    %p27 = scmp.eq.s32.totalorder 0, 0
    // Predicated region
    $region18: #{domain_classifier.1} parent=1 // pred_check
      %p28 = pneg %p27
    $region19: #{domain_classifier.1} parent=1 // pred_check_branch
      %30 = sbr.rel (%p28) target = $region21
    $region20: #{domain_classifier.1} parent=1 // pred_region
      %vm31 = vcmask 7168
      %32 = vst.msk [vmem:[#allocation2] sm:$0xff] %vm31, 0.0
    $region21: #{domain_classifier.1} parent=1 // pred_fallthru
      _
    %v33 = vld [vmem:[#allocation4] sm:$0xff]
    %v34 = vld [vmem:[%s1] sm:$0x1]
    %v36 = vlaneseq
    %v37 = vshrl.u32 %v36, 7
    %v38 = vsub.s32 0, %v37
    %v39 = vrot.slane %v34, %v38
    %v41 = vmul.f32 %v33, %v39
    %vm42 = vcmask 261120
    %v43 = vsel %vm42, %v41, 0.0
    %44 = vadd.xlane.f32.xlu0 %v43
    %v45 = vpop.xlane.xlu0 %44
    %v46 = vld [vmem:[#allocation2] sm:$0xff]
    %v47 = vadd.f32 %v46, %v45
    %vm48 = vcmask 7168
    %49 = vst.msk [vmem:[#allocation2] sm:$0xff] %vm48, %v47
    // Predicated region
    $region22: #{domain_classifier.1} parent=1 // pred_check
      %p50 = pneg %p27
    $region23: #{domain_classifier.1} parent=1 // pred_check_branch
      %52 = sbr.rel (%p50) target = $region25
    $region24: #{domain_classifier.1} parent=1 // pred_region
      %v53 = vld [vmem:[#allocation2] sm:$0xff]
      %s54 = sld [smem:[#allocation3]]
      %v55 = vstv %s54
      %v56 = vadd.f32 %v53, %v55
      %v57 = vxor.u32 %v56, 2147483648
      %v58 = vmul.f32 %v57, 1.442695
      %v59 = vpow.pop %v58
      %v60 = vadd.f32 %v59, 1.0
      %v61 = vrcp.pop %v60
      %v62 = vmul.f32 1.0, %v61
      %63 = vst.msk [vmem:[%s3] sm:$0xff] %vm48, %v62
    $region25: #{domain_classifier.1} parent=1 // pred_fallthru
      _
    // Predicated region
    $region26: #{domain_classifier.1} parent=1 // pred_check
      _
    $region27: #{domain_classifier.1} parent=1 // pred_check_branch
      %65 = sbr.rel (0) target = $region29
    $region28: #{domain_classifier.1} parent=1 // pred_region
      _
    $region29: #{domain_classifier.1} parent=1 // pred_fallthru
      _
    // Predicated region
    $region30: #{domain_classifier.1} parent=1 // pred_check
      _
    $region31: #{domain_classifier.1} parent=1 // pred_check_branch
      %67 = sbr.rel (0) target = $region33
    $region32: #{domain_classifier.1} parent=1 // pred_region
      _
    $region33: #{domain_classifier.1} parent=1 // pred_fallthru
      _
    %68 = vsyncpa [#allocation5], 1

</llo_original>
